<compile_context>
chip_gen: v6e
topology: v6e:2x2x1
jax: 0.10.0
libtpu: 0.0.40
codegen_flags: <defaults>
</compile_context>

<pallas_src>
import jax
import jax.numpy as jnp
from jax.experimental import pallas as pl
from jax.experimental.pallas import tpu as pltpu


def _round_up(x, m):
    return ((x + m - 1) // m) * m


def _setsize_kernel(cells_ref, tracks_ref,
                    w1c_ref, w1t_ref, b1_ref,
                    w2_ref, b2_ref,
                    w3_ref, b3_ref,
                    out_ref,
                    acc_c_ref, acc_t_ref):
    k = pl.program_id(1)

    # --- init per-batch-tile accumulators at the first node step ---
    @pl.when(k == 0)
    def _():
        acc_c_ref[...] = jnp.zeros_like(acc_c_ref)
        acc_t_ref[...] = jnp.zeros_like(acc_t_ref)

    # --- accumulate node-feature sums (1/N already folded into w1c/w1t) ---
    acc_c_ref[...] += jnp.sum(cells_ref[...], axis=1)    # [tb, D]
    acc_t_ref[...] += jnp.sum(tracks_ref[...], axis=1)   # [tb, D]

    # --- on the last node step, run the (tiny) 3-layer MLP and store ---
    @pl.when(k == pl.num_programs(1) - 1)
    def _():
        # Linear(2D -> f0): concat([c, t]) @ W1 == c @ W1[:D] + t @ W1[D:]
        h = (jnp.dot(acc_c_ref[...], w1c_ref[...], preferred_element_type=jnp.float32)
             + jnp.dot(acc_t_ref[...], w1t_ref[...], preferred_element_type=jnp.float32)
             + b1_ref[...])
        h = jnp.maximum(h, 0.0)                          # ReLU
        # Linear(f0 -> f1) with eval-mode BatchNorm folded in, + ReLU
        h = jnp.dot(h, w2_ref[...], preferred_element_type=jnp.float32) + b2_ref[...]
        h = jnp.maximum(h, 0.0)
        # Linear(f1 -> out_pad)  (columns out_dim..out_pad-1 are zero padding)
        out = jnp.dot(h, w3_ref[...], preferred_element_type=jnp.float32) + b3_ref[...]
        out_ref[...] = out.astype(out_ref.dtype)


def _choose_tiles(b_pad, n_max, d, itemsize):
    """Pick batch/node tile sizes that keep double-buffered input tiles under ~12 MiB."""
    tb = min(b_pad, 128)
    budget = 12 * 1024 * 1024
    tn = budget // (2 * 2 * tb * d * itemsize)            # 2 inputs x 2 pipeline buffers
    tn = max(8, min((tn // 8) * 8, _round_up(n_max, 8), 512))
    return tb, tn


def setsize_predictor(cells, tracks, kparams, node_tile=None):
    """cells: [B, Nc, D], tracks: [B, Nt, D]  ->  [B, 400] (f32)."""
    B, Nc, D = cells.shape
    _, Nt, _ = tracks.shape
    out_dim = kparams["out_dim"]
    out_pad = kparams["b3"].shape[-1]
    f0 = kparams["w1c"].shape[1]
    f1 = kparams["w2"].shape[1]

    # --- padding: sublane-multiple batch, common node-tile-multiple node axis ---
    b_pad = _round_up(B, 8) if B <= 128 else _round_up(B, 128)
    tb, tn = _choose_tiles(b_pad, max(Nc, Nt), D, cells.dtype.itemsize)
    if node_tile is not None:
        tn = max(8, _round_up(min(node_tile, max(Nc, Nt)), 8))
    n_pad = _round_up(max(Nc, Nt), tn)

    # zero padding is exact: node sums ignore zero rows (1/N uses the true counts,
    # folded into w1c/w1t); padded batch rows are sliced off below.
    cells_p = jnp.pad(cells, ((0, b_pad - B), (0, n_pad - Nc), (0, 0)))
    tracks_p = jnp.pad(tracks, ((0, b_pad - B), (0, n_pad - Nt), (0, 0)))

    weight_args = (kparams["w1c"], kparams["w1t"], kparams["b1"],
                   kparams["w2"], kparams["b2"],
                   kparams["w3"], kparams["b3"])

    def full_spec(a):
        nd = a.ndim
        return pl.BlockSpec(a.shape, lambda i, k, _nd=nd: (0,) * _nd)

    in_specs = ([pl.BlockSpec((tb, tn, D), lambda i, k: (i, k, 0)),
                 pl.BlockSpec((tb, tn, D), lambda i, k: (i, k, 0))]
                + [full_spec(a) for a in weight_args])

    grid = (b_pad // tb, n_pad // tn)

    # advisory cost hint for the XLA scheduler
    flops = int(2 * b_pad * (2 * D * f0 + f0 * f1 + f1 * out_pad)   # MLP matmuls
                + 2 * b_pad * n_pad * D)                            # node sums
    bytes_accessed = int((cells_p.size + tracks_p.size + b_pad * out_pad
                          + sum(int(a.size) for a in weight_args)) * 4)
    cost = pl.CostEstimate(flops=flops, transcendentals=0,
                           bytes_accessed=bytes_accessed)

    out = pl.pallas_call(
        _setsize_kernel,
        out_shape=jax.ShapeDtypeStruct((b_pad, out_pad), jnp.float32),
        grid_spec=pltpu.PrefetchScalarGridSpec(
            num_scalar_prefetch=0,
            grid=grid,
            in_specs=in_specs,
            out_specs=pl.BlockSpec((tb, out_pad), lambda i, k: (i, 0)),
            scratch_shapes=[pltpu.VMEM((tb, D), jnp.float32),
                            pltpu.VMEM((tb, D), jnp.float32)],
        ),
        compiler_params=pltpu.CompilerParams(
            dimension_semantics=("parallel", "arbitrary"),
            vmem_limit_bytes=48 * 1024 * 1024,   # under v7x's 64 MiB physical VMEM
        ),
        cost_estimate=cost,
    )(cells_p, tracks_p, *weight_args)

    return out[:B, :out_dim]


def prepare_kernel_params(params, n_cells, n_tracks, feat_dim, lane_pad=128):
    """Fold constants into the weights (host-side, once):
         * 1/Nc, 1/Nt into the split first-layer weights,
         * eval-mode BatchNorm affine into Linear(f0->f1),
         * zero-pad the output layer to a 128-lane multiple."""
    eps = 1e-5
    bn_scale = params["gamma"] / jnp.sqrt(params["running_var"] + eps)   # [1, f0]
    bn_shift = params["beta"] - params["running_mean"] * bn_scale        # [1, f0]

    w1 = params["w1"]
    w1c = w1[:feat_dim] / jnp.float32(n_cells)
    w1t = w1[feat_dim:] / jnp.float32(n_tracks)

    w2 = params["w2"] * bn_scale.T                       # scale rows of w2
    b2 = params["b2"] + bn_shift @ params["w2"]

    out_dim = params["b3"].shape[-1]
    out_pad = _round_up(out_dim, lane_pad)
    w3 = jnp.pad(params["w3"], ((0, 0), (0, out_pad - out_dim)))
    b3 = jnp.pad(params["b3"], ((0, 0), (0, out_pad - out_dim)))

    return {"w1c": w1c, "w1t": w1t, "b1": params["b1"],
            "w2": w2, "b2": b2, "w3": w3, "b3": b3,
            "out_dim": out_dim}


def init_params(key, feat_dim, features, out_dim):
    """Deterministic synthetic PyTorch-style parameters (weights stored [in, out])."""
    d_in = 2 * feat_dim
    f0, f1 = features
    keys = jax.random.split(key, 8)

    def lin(k, fan_in, fan_out):
        scale = 1.0 / jnp.sqrt(jnp.float32(fan_in))
        w = jax.random.uniform(k, (fan_in, fan_out), jnp.float32, -scale, scale)
        b = jax.random.uniform(jax.random.fold_in(k, 1), (1, fan_out), jnp.float32,
                               -scale, scale)
        return w, b

    w1, b1 = lin(keys[0], d_in, f0)
    w2, b2 = lin(keys[1], f0, f1)
    w3, b3 = lin(keys[2], f1, out_dim)

    gamma = 1.0 + 0.1 * jax.random.normal(keys[3], (1, f0), jnp.float32)
    beta = 0.1 * jax.random.normal(keys[4], (1, f0), jnp.float32)
    running_mean = 0.05 * jax.random.normal(keys[5], (1, f0), jnp.float32)
    running_var = 1.0 + 0.1 * jax.random.uniform(keys[6], (1, f0), jnp.float32)

    return {"w1": w1, "b1": b1, "w2": w2, "b2": b2, "w3": w3, "b3": b3,
            "gamma": gamma, "beta": beta,
            "running_mean": running_mean, "running_var": running_var}


def reference_forward(cells, tracks, p):
    """Pure-JAX reference using the UNfolded params (validates all host-side folds)."""
    c = jnp.mean(cells, axis=1)
    t = jnp.mean(tracks, axis=1)
    x = jnp.concatenate([c, t], axis=1)
    h = jnp.maximum(x @ p["w1"] + p["b1"], 0.0)
    h = (h - p["running_mean"]) / jnp.sqrt(p["running_var"] + 1e-5) * p["gamma"] + p["beta"]
    h = jnp.maximum(h @ p["w2"] + p["b2"], 0.0)
    return h @ p["w3"] + p["b3"]


if __name__ == "__main__":
    B, N_CELLS, N_TRACKS, D = 2, 24, 16, 32   # 'set size predictor input size' = 2*D = 64
    FEATURES = [64, 64]                       # config['set size predictor layers']
    OUT_DIM = 400

    key = jax.random.PRNGKey(0)
    k_cells, k_tracks, k_params = jax.random.split(key, 3)

    cells = jax.random.normal(k_cells, (B, N_CELLS, D), jnp.float32)
    tracks = jax.random.normal(k_tracks, (B, N_TRACKS, D), jnp.float32)
    params = init_params(k_params, D, FEATURES, OUT_DIM)
    kparams = prepare_kernel_params(params, N_CELLS, N_TRACKS, D)
    ref = reference_forward(cells, tracks, params)

    # single-node-step path (auto tile choice)
    out = jax.block_until_ready(setsize_predictor(cells, tracks, kparams))
    assert out.shape == (B, OUT_DIM)
    assert jnp.allclose(out, ref, atol=1e-4, rtol=1e-4), "Pallas mismatch (auto tile)"

    # multi-node-step path (exercises the pl.when accumulation over the node grid axis)
    out_multi = jax.block_until_ready(setsize_predictor(cells, tracks, kparams, node_tile=8))
    assert jnp.allclose(out_multi, ref, atol=1e-4, rtol=1e-4), "Pallas mismatch (tiled nodes)"

    print("KERNEL_OK")
</pallas_src>

<mosaic_0001>
module attributes {stable_mosaic.version = 11 : i64} {
  func.func @_setsize_kernel(%arg0: i32, %arg1: i32, %arg2: memref<8x24x32xf32, #tpu.memory_space<vmem>>, %arg3: memref<8x24x32xf32, #tpu.memory_space<vmem>>, %arg4: memref<32x64xf32, #tpu.memory_space<vmem>>, %arg5: memref<32x64xf32, #tpu.memory_space<vmem>>, %arg6: memref<1x64xf32, #tpu.memory_space<vmem>>, %arg7: memref<64x64xf32, #tpu.memory_space<vmem>>, %arg8: memref<1x64xf32, #tpu.memory_space<vmem>>, %arg9: memref<64x512xf32, #tpu.memory_space<vmem>>, %arg10: memref<1x512xf32, #tpu.memory_space<vmem>>, %arg11: memref<8x512xf32, #tpu.memory_space<vmem>>, %arg12: memref<8x32xf32, #tpu.memory_space<vmem>>, %arg13: memref<8x32xf32, #tpu.memory_space<vmem>>) attributes {dimension_semantics = [#tpu.dimension_semantics<parallel>, #tpu.dimension_semantics<arbitrary>], iteration_bounds = array<i64: 1, 1>, scalar_prefetch = 0 : i64, scratch_operands = 2 : i64, tpu.core_type = #tpu.core_type<tc>, window_params = [{transform_indices = @transform_0, window_bounds = array<i64: 8, 24, 32>}, {transform_indices = @transform_1, window_bounds = array<i64: 8, 24, 32>}, {pipeline_mode = #tpu.pipeline_mode<synchronous>, transform_indices = @transform_2, window_bounds = array<i64: 32, 64>}, {pipeline_mode = #tpu.pipeline_mode<synchronous>, transform_indices = @transform_3, window_bounds = array<i64: 32, 64>}, {pipeline_mode = #tpu.pipeline_mode<synchronous>, transform_indices = @transform_4, window_bounds = array<i64: 1, 64>}, {pipeline_mode = #tpu.pipeline_mode<synchronous>, transform_indices = @transform_5, window_bounds = array<i64: 64, 64>}, {pipeline_mode = #tpu.pipeline_mode<synchronous>, transform_indices = @transform_6, window_bounds = array<i64: 1, 64>}, {pipeline_mode = #tpu.pipeline_mode<synchronous>, transform_indices = @transform_7, window_bounds = array<i64: 64, 512>}, {pipeline_mode = #tpu.pipeline_mode<synchronous>, transform_indices = @transform_8, window_bounds = array<i64: 1, 512>}, {transform_indices = @transform_9, window_bounds = array<i64: 8, 512>}]} {
    %c0_i32 = arith.constant 0 : i32
    %0 = arith.cmpi eq, %arg1, %c0_i32 : i32
    %1 = arith.extui %0 : i1 to i32
    %c0_i32_0 = arith.constant 0 : i32
    %2 = arith.cmpi ne, %1, %c0_i32_0 : i32
    scf.if %2 {
      %cst_17 = arith.constant 0.000000e+00 : f32
      %16 = vector.broadcast %cst_17 : f32 to vector<8x32xf32>
      %c0_18 = arith.constant 0 : index
      %c0_19 = arith.constant 0 : index
      %17 = vector.load %arg12[%c0_18, %c0_19] : memref<8x32xf32, #tpu.memory_space<vmem>>, vector<8x32xf32>
      tpu.vector_store %arg12[%c0_18, %c0_19], %16 {strides = array<i32>} : memref<8x32xf32, #tpu.memory_space<vmem>>, vector<8x32xf32>,
      %cst_20 = arith.constant 0.000000e+00 : f32
      %18 = vector.broadcast %cst_20 : f32 to vector<8x32xf32>
      %c0_21 = arith.constant 0 : index
      %c0_22 = arith.constant 0 : index
      %19 = vector.load %arg13[%c0_21, %c0_22] : memref<8x32xf32, #tpu.memory_space<vmem>>, vector<8x32xf32>
      tpu.vector_store %arg13[%c0_21, %c0_22], %18 {strides = array<i32>} : memref<8x32xf32, #tpu.memory_space<vmem>>, vector<8x32xf32>,
    } else {
    }
    %c0 = arith.constant 0 : index
    %c0_1 = arith.constant 0 : index
    %3 = vector.load %arg12[%c0, %c0_1] : memref<8x32xf32, #tpu.memory_space<vmem>>, vector<8x32xf32>
    %c0_2 = arith.constant 0 : index
    %c0_3 = arith.constant 0 : index
    %c0_4 = arith.constant 0 : index
    %4 = vector.load %arg2[%c0_2, %c0_3, %c0_4] : memref<8x24x32xf32, #tpu.memory_space<vmem>>, vector<8x24x32xf32>
    %cst = arith.constant dense<0.000000e+00> : vector<8x32xf32>
    %5 = vector.multi_reduction <add>, %4, %cst [1] : vector<8x24x32xf32> to vector<8x32xf32>
    %6 = arith.addf %3, %5 : vector<8x32xf32>
    %c0_5 = arith.constant 0 : index
    %c0_6 = arith.constant 0 : index
    %7 = vector.load %arg12[%c0_5, %c0_6] : memref<8x32xf32, #tpu.memory_space<vmem>>, vector<8x32xf32>
    tpu.vector_store %arg12[%c0_5, %c0_6], %6 {strides = array<i32>} : memref<8x32xf32, #tpu.memory_space<vmem>>, vector<8x32xf32>,
    %c0_7 = arith.constant 0 : index
    %c0_8 = arith.constant 0 : index
    %8 = vector.load %arg13[%c0_7, %c0_8] : memref<8x32xf32, #tpu.memory_space<vmem>>, vector<8x32xf32>
    %c0_9 = arith.constant 0 : index
    %c0_10 = arith.constant 0 : index
    %c0_11 = arith.constant 0 : index
    %9 = vector.load %arg3[%c0_9, %c0_10, %c0_11] : memref<8x24x32xf32, #tpu.memory_space<vmem>>, vector<8x24x32xf32>
    %cst_12 = arith.constant dense<0.000000e+00> : vector<8x32xf32>
    %10 = vector.multi_reduction <add>, %9, %cst_12 [1] : vector<8x24x32xf32> to vector<8x32xf32>
    %11 = arith.addf %8, %10 : vector<8x32xf32>
    %c0_13 = arith.constant 0 : index
    %c0_14 = arith.constant 0 : index
    %12 = vector.load %arg13[%c0_13, %c0_14] : memref<8x32xf32, #tpu.memory_space<vmem>>, vector<8x32xf32>
    tpu.vector_store %arg13[%c0_13, %c0_14], %11 {strides = array<i32>} : memref<8x32xf32, #tpu.memory_space<vmem>>, vector<8x32xf32>,
    %c0_i32_15 = arith.constant 0 : i32
    %13 = arith.cmpi eq, %arg1, %c0_i32_15 : i32
    %14 = arith.extui %13 : i1 to i32
    %c0_i32_16 = arith.constant 0 : i32
    %15 = arith.cmpi ne, %14, %c0_i32_16 : i32
    scf.if %15 {
      %c0_17 = arith.constant 0 : index
      %c0_18 = arith.constant 0 : index
      %16 = vector.load %arg12[%c0_17, %c0_18] : memref<8x32xf32, #tpu.memory_space<vmem>>, vector<8x32xf32>
      %c0_19 = arith.constant 0 : index
      %c0_20 = arith.constant 0 : index
      %17 = vector.load %arg4[%c0_19, %c0_20] : memref<32x64xf32, #tpu.memory_space<vmem>>, vector<32x64xf32>
      %cst_21 = arith.constant dense<0.000000e+00> : vector<8x64xf32>
      %18 = tpu.matmul %16, %17, %cst_21 {dimension_numbers = #tpu.dot_dimension_numbers<[1], [0], [0], [1], [0, 0, 1, 1], [], []>} : vector<8x32xf32>, vector<32x64xf32>, vector<8x64xf32> -> vector<8x64xf32>
      %c0_22 = arith.constant 0 : index
      %c0_23 = arith.constant 0 : index
      %19 = vector.load %arg13[%c0_22, %c0_23] : memref<8x32xf32, #tpu.memory_space<vmem>>, vector<8x32xf32>
      %c0_24 = arith.constant 0 : index
      %c0_25 = arith.constant 0 : index
      %20 = vector.load %arg5[%c0_24, %c0_25] : memref<32x64xf32, #tpu.memory_space<vmem>>, vector<32x64xf32>
      %cst_26 = arith.constant dense<0.000000e+00> : vector<8x64xf32>
      %21 = tpu.matmul %19, %20, %cst_26 {dimension_numbers = #tpu.dot_dimension_numbers<[1], [0], [0], [1], [0, 0, 1, 1], [], []>} : vector<8x32xf32>, vector<32x64xf32>, vector<8x64xf32> -> vector<8x64xf32>
      %22 = arith.addf %18, %21 : vector<8x64xf32>
      %c0_27 = arith.constant 0 : index
      %c0_28 = arith.constant 0 : index
      %23 = vector.load %arg6[%c0_27, %c0_28] : memref<1x64xf32, #tpu.memory_space<vmem>>, vector<1x64xf32>
      %24 = vector.broadcast %23 : vector<1x64xf32> to vector<8x64xf32>
      %25 = arith.addf %22, %24 : vector<8x64xf32>
      %cst_29 = arith.constant 0.000000e+00 : f32
      %26 = vector.broadcast %cst_29 : f32 to vector<8x64xf32>
      %27 = arith.maximumf %25, %26 : vector<8x64xf32>
      %c0_30 = arith.constant 0 : index
      %c0_31 = arith.constant 0 : index
      %28 = vector.load %arg7[%c0_30, %c0_31] : memref<64x64xf32, #tpu.memory_space<vmem>>, vector<64x64xf32>
      %cst_32 = arith.constant dense<0.000000e+00> : vector<8x64xf32>
      %29 = tpu.matmul %27, %28, %cst_32 {dimension_numbers = #tpu.dot_dimension_numbers<[1], [0], [0], [1], [0, 0, 1, 1], [], []>} : vector<8x64xf32>, vector<64x64xf32>, vector<8x64xf32> -> vector<8x64xf32>
      %c0_33 = arith.constant 0 : index
      %c0_34 = arith.constant 0 : index
      %30 = vector.load %arg8[%c0_33, %c0_34] : memref<1x64xf32, #tpu.memory_space<vmem>>, vector<1x64xf32>
      %31 = vector.broadcast %30 : vector<1x64xf32> to vector<8x64xf32>
      %32 = arith.addf %29, %31 : vector<8x64xf32>
      %cst_35 = arith.constant 0.000000e+00 : f32
      %33 = vector.broadcast %cst_35 : f32 to vector<8x64xf32>
      %34 = arith.maximumf %32, %33 : vector<8x64xf32>
      %c0_36 = arith.constant 0 : index
      %c0_37 = arith.constant 0 : index
      %35 = vector.load %arg9[%c0_36, %c0_37] : memref<64x512xf32, #tpu.memory_space<vmem>>, vector<64x512xf32>
      %cst_38 = arith.constant dense<0.000000e+00> : vector<8x512xf32>
      %36 = tpu.matmul %34, %35, %cst_38 {dimension_numbers = #tpu.dot_dimension_numbers<[1], [0], [0], [1], [0, 0, 1, 1], [], []>} : vector<8x64xf32>, vector<64x512xf32>, vector<8x512xf32> -> vector<8x512xf32>
      %c0_39 = arith.constant 0 : index
      %c0_40 = arith.constant 0 : index
      %37 = vector.load %arg10[%c0_39, %c0_40] : memref<1x512xf32, #tpu.memory_space<vmem>>, vector<1x512xf32>
      %38 = vector.broadcast %37 : vector<1x512xf32> to vector<8x512xf32>
      %39 = arith.addf %36, %38 : vector<8x512xf32>
      %c0_41 = arith.constant 0 : index
      %c0_42 = arith.constant 0 : index
      %40 = vector.load %arg11[%c0_41, %c0_42] : memref<8x512xf32, #tpu.memory_space<vmem>>, vector<8x512xf32>
      tpu.vector_store %arg11[%c0_41, %c0_42], %39 {strides = array<i32>} : memref<8x512xf32, #tpu.memory_space<vmem>>, vector<8x512xf32>,
    } else {
    }
    return
  }
  func.func @transform_0(%arg0: i32, %arg1: i32) -> (i32, i32, i32) {
    %c0_i32 = arith.constant 0 : i32
    %c0_i32_0 = arith.constant 0 : i32
    return %arg0, %arg1, %c0_i32 : i32, i32, i32
  }
  func.func @transform_1(%arg0: i32, %arg1: i32) -> (i32, i32, i32) {
    %c0_i32 = arith.constant 0 : i32
    %c0_i32_0 = arith.constant 0 : i32
    return %arg0, %arg1, %c0_i32 : i32, i32, i32
  }
  func.func @transform_2(%arg0: i32, %arg1: i32) -> (i32, i32) {
    %c0_i32 = arith.constant 0 : i32
    %c0_i32_0 = arith.constant 0 : i32
    %c0_i32_1 = arith.constant 0 : i32
    return %c0_i32, %c0_i32_0 : i32, i32
  }
  func.func @transform_3(%arg0: i32, %arg1: i32) -> (i32, i32) {
    %c0_i32 = arith.constant 0 : i32
    %c0_i32_0 = arith.constant 0 : i32
    %c0_i32_1 = arith.constant 0 : i32
    return %c0_i32, %c0_i32_0 : i32, i32
  }
  func.func @transform_4(%arg0: i32, %arg1: i32) -> (i32, i32) {
    %c0_i32 = arith.constant 0 : i32
    %c0_i32_0 = arith.constant 0 : i32
    %c0_i32_1 = arith.constant 0 : i32
    return %c0_i32, %c0_i32_0 : i32, i32
  }
  func.func @transform_5(%arg0: i32, %arg1: i32) -> (i32, i32) {
    %c0_i32 = arith.constant 0 : i32
    %c0_i32_0 = arith.constant 0 : i32
    %c0_i32_1 = arith.constant 0 : i32
    return %c0_i32, %c0_i32_0 : i32, i32
  }
  func.func @transform_6(%arg0: i32, %arg1: i32) -> (i32, i32) {
    %c0_i32 = arith.constant 0 : i32
    %c0_i32_0 = arith.constant 0 : i32
    %c0_i32_1 = arith.constant 0 : i32
    return %c0_i32, %c0_i32_0 : i32, i32
  }
  func.func @transform_7(%arg0: i32, %arg1: i32) -> (i32, i32) {
    %c0_i32 = arith.constant 0 : i32
    %c0_i32_0 = arith.constant 0 : i32
    %c0_i32_1 = arith.constant 0 : i32
    return %c0_i32, %c0_i32_0 : i32, i32
  }
  func.func @transform_8(%arg0: i32, %arg1: i32) -> (i32, i32) {
    %c0_i32 = arith.constant 0 : i32
    %c0_i32_0 = arith.constant 0 : i32
    %c0_i32_1 = arith.constant 0 : i32
    return %c0_i32, %c0_i32_0 : i32, i32
  }
  func.func @transform_9(%arg0: i32, %arg1: i32) -> (i32, i32) {
    %c0_i32 = arith.constant 0 : i32
    %c0_i32_0 = arith.constant 0 : i32
    return %arg0, %c0_i32 : i32, i32
  }
}

</mosaic_0001>

<llo_original>
// kernel: tpu_custom_call.1
$region0: #{tpu_custom_call.1}
  #allocation0 [shape = 'u32[]', space=smem, size = 0x4, offset = 0x4, fixed_abs, tag = 'smem constant byte address 0x4 - core index']
  #allocation1 [shape = 'u32[144,128]{1,0:T(1,128)}', space=vmem, size = 0x12000, scoped, tag = 'internal scratch']
  #allocation2 [shape = 'f32[8,32]{1,0:T(8,128)}', space=vmem, size = 0x1000, scoped, tag = 'scratch operand']
  #allocation3 [shape = 'f32[8,32]{1,0:T(8,128)}', space=vmem, size = 0x1000, scoped, tag = 'scratch operand']
  %s0 = inlined_call_operand.hbm [shape: f32[8,24,32], index: 0, kind: input, shape index: {}]
  %s1 = inlined_call_operand.hbm [shape: f32[8,24,32], index: 1, kind: input, shape index: {}]
  %s2 = inlined_call_operand.hbm [shape: f32[32,64], index: 2, kind: input, shape index: {}]
  %s3 = inlined_call_operand.hbm [shape: f32[32,64], index: 3, kind: input, shape index: {}]
  %s4 = inlined_call_operand.vmem [shape: f32[1,64], index: 4, kind: input, shape index: {}]
  %s5 = inlined_call_operand.hbm [shape: f32[64,64], index: 5, kind: input, shape index: {}]
  %s6 = inlined_call_operand.vmem [shape: f32[1,64], index: 6, kind: input, shape index: {}]
  %s7 = inlined_call_operand.hbm [shape: f32[64,512], index: 7, kind: input, shape index: {}]
  %s8 = inlined_call_operand.vmem [shape: f32[1,512], index: 8, kind: input, shape index: {}]
  %s9 = inlined_call_operand.hbm [shape: f32[8,512], index: 9, kind: output, shape index: {}]
  %s10 = sld [smem:[#allocation0]]
  $region78: #{tpu_custom_call.1} parent=0
    _
  %s12 = ssub.s32 1, %s10
  %s13 = scalar_select 0, %s12, %s10
  $region1: #{tpu_custom_call.1} parent=0
    #allocation4 [shape = 'u8[98304]{0}', space=vmem, size = 0x18000, scoped, tag = 'input window, operand 0, single buffered']
    #allocation5 [shape = 's32[1]{0}', space=sflag, size = 0x4, scoped, tag = 'scoped memory for tpu_custom_call.1']
    #allocation6 [shape = 's32[1]{0}', space=sflag, size = 0x4, scoped, tag = 'scoped memory for tpu_custom_call.1']
    #allocation7 [shape = 'u8[98304]{0}', space=vmem, size = 0x18000, scoped, tag = 'input window, operand 1, single buffered']
    #allocation8 [shape = 's32[1]{0}', space=sflag, size = 0x4, scoped, tag = 'scoped memory for tpu_custom_call.1']
    #allocation9 [shape = 'u8[16384]{0}', space=vmem, size = 0x4000, scoped, tag = 'input window, operand 2, single buffered']
    #allocation10 [shape = 'u8[16384]{0}', space=vmem, size = 0x4000, scoped, tag = 'input window, operand 3, single buffered']
    #allocation11 [shape = 's32[1]{0}', space=sflag, size = 0x4, scoped, tag = 'scoped memory for tpu_custom_call.1']
    #allocation12 [shape = 'u8[32768]{0}', space=vmem, size = 0x8000, scoped, tag = 'input window, operand 5, single buffered']
    #allocation13 [shape = 'u8[131072]{0}', space=vmem, size = 0x20000, scoped, tag = 'input window, operand 7, single buffered']
    #allocation14 [shape = 's32[1]{0}', space=sflag, size = 0x4, scoped, tag = 'scoped memory for tpu_custom_call.1']
    #allocation15 [shape = 'u8[16384]{0}', space=vmem, size = 0x4000, scoped, tag = 'output window, operand 0, single buffered']
    %14 = vsyncpa [#allocation5], 0
    %15 = vsyncpa [#allocation8], 0
    %16 = vsyncpa [#allocation11], 0
    %17 = vsyncpa [#allocation14], 0
    %18 = vsyncpa [#allocation6], 0
    // Predicated region
    $region2: #{tpu_custom_call.1} parent=1 // pred_check
      _
    $region3: #{tpu_custom_call.1} parent=1 // pred_check_branch
      %20 = sbr.rel (0) target = $region5
    $region4: #{tpu_custom_call.1} parent=1 // pred_region
      %s22 = ssub.s32 3072, 3072
      %23 = vsyncadd [#allocation5], %s22
      %s24 = sshll.u32 [#allocation4], 4
      %s25 = int_to_ptr.vmem [resolvable:$true] %s24
      %30 = dma.hbm_to_vmem [thread:$0]  %s0, 3072, %s25, [#allocation5], 128, 128, 8
    $region5: #{tpu_custom_call.1} parent=1 // pred_fallthru
      _
    // Predicated region
    $region6: #{tpu_custom_call.1} parent=1 // pred_check
      _
    $region7: #{tpu_custom_call.1} parent=1 // pred_check_branch
      %32 = sbr.rel (0) target = $region9
    $region8: #{tpu_custom_call.1} parent=1 // pred_region
      %s34 = ssub.s32 3072, 3072
      %35 = vsyncadd [#allocation8], %s34
      %s36 = sshll.u32 [#allocation7], 4
      %s37 = int_to_ptr.vmem [resolvable:$true] %s36
      %42 = dma.hbm_to_vmem [thread:$0]  %s1, 3072, %s37, [#allocation8], 128, 128, 8
    $region9: #{tpu_custom_call.1} parent=1 // pred_fallthru
      _
    // Predicated region
    $region10: #{tpu_custom_call.1} parent=1 // pred_check
      _
    $region11: #{tpu_custom_call.1} parent=1 // pred_check_branch
      %44 = sbr.rel (0) target = $region13
    $region12: #{tpu_custom_call.1} parent=1 // pred_region
      %s46 = ssub.s32 512, 512
      %47 = vsyncadd [#allocation8], %s46
      %s48 = sshll.u32 [#allocation9], 4
      %s49 = int_to_ptr.vmem [resolvable:$true] %s48
      %54 = dma.hbm_to_vmem [thread:$0]  %s2, 512, %s49, [#allocation8], 128, 128, 8
    $region13: #{tpu_custom_call.1} parent=1 // pred_fallthru
      _
    // Predicated region
    $region14: #{tpu_custom_call.1} parent=1 // pred_check
      _
    $region15: #{tpu_custom_call.1} parent=1 // pred_check_branch
      %56 = sbr.rel (0) target = $region17
    $region16: #{tpu_custom_call.1} parent=1 // pred_region
      %s58 = ssub.s32 512, 512
      %59 = vsyncadd [#allocation11], %s58
      %s60 = sshll.u32 [#allocation10], 4
      %s61 = int_to_ptr.vmem [resolvable:$true] %s60
      %66 = dma.hbm_to_vmem [thread:$0]  %s3, 512, %s61, [#allocation11], 128, 128, 8
    $region17: #{tpu_custom_call.1} parent=1 // pred_fallthru
      _
    // Predicated region
    $region18: #{tpu_custom_call.1} parent=1 // pred_check
      _
    $region19: #{tpu_custom_call.1} parent=1 // pred_check_branch
      %68 = sbr.rel (0) target = $region21
    $region20: #{tpu_custom_call.1} parent=1 // pred_region
      _
    $region21: #{tpu_custom_call.1} parent=1 // pred_fallthru
      _
    // Predicated region
    $region22: #{tpu_custom_call.1} parent=1 // pred_check
      _
    $region23: #{tpu_custom_call.1} parent=1 // pred_check_branch
      %70 = sbr.rel (0) target = $region25
    $region24: #{tpu_custom_call.1} parent=1 // pred_region
      %s72 = ssub.s32 1024, 1024
      %73 = vsyncadd [#allocation11], %s72
      %s74 = sshll.u32 [#allocation12], 4
      %s75 = int_to_ptr.vmem [resolvable:$true] %s74
      %80 = dma.hbm_to_vmem [thread:$0]  %s5, 1024, %s75, [#allocation11], 128, 128, 8
    $region25: #{tpu_custom_call.1} parent=1 // pred_fallthru
      _
    // Predicated region
    $region26: #{tpu_custom_call.1} parent=1 // pred_check
      _
    $region27: #{tpu_custom_call.1} parent=1 // pred_check_branch
      %82 = sbr.rel (0) target = $region29
    $region28: #{tpu_custom_call.1} parent=1 // pred_region
      _
    $region29: #{tpu_custom_call.1} parent=1 // pred_fallthru
      _
    // Predicated region
    $region30: #{tpu_custom_call.1} parent=1 // pred_check
      _
    $region31: #{tpu_custom_call.1} parent=1 // pred_check_branch
      %84 = sbr.rel (0) target = $region33
    $region32: #{tpu_custom_call.1} parent=1 // pred_region
      %s86 = ssub.s32 4096, 4096
      %87 = vsyncadd [#allocation14], %s86
      %s88 = sshll.u32 [#allocation13], 4
      %s89 = int_to_ptr.vmem [resolvable:$true] %s88
      %94 = dma.hbm_to_vmem [thread:$0]  %s7, 4096, %s89, [#allocation14], 512, 512, 32
    $region33: #{tpu_custom_call.1} parent=1 // pred_fallthru
      _
    // Predicated region
    $region34: #{tpu_custom_call.1} parent=1 // pred_check
      _
    $region35: #{tpu_custom_call.1} parent=1 // pred_check_branch
      %96 = sbr.rel (0) target = $region37
    $region36: #{tpu_custom_call.1} parent=1 // pred_region
      _
    $region37: #{tpu_custom_call.1} parent=1 // pred_fallthru
      _
    // Predicated region
    $region38: #{tpu_custom_call.1} parent=1 // pred_check
      _
    $region39: #{tpu_custom_call.1} parent=1 // pred_check_branch
      %98 = sbr.rel (0) target = $region41
    $region40: #{tpu_custom_call.1} parent=1 // pred_region
      %99 = dma.done [#allocation5], 3072
    $region41: #{tpu_custom_call.1} parent=1 // pred_fallthru
      _
    // Predicated region
    $region42: #{tpu_custom_call.1} parent=1 // pred_check
      _
    $region43: #{tpu_custom_call.1} parent=1 // pred_check_branch
      %101 = sbr.rel (0) target = $region45
    $region44: #{tpu_custom_call.1} parent=1 // pred_region
      %102 = dma.done [#allocation8], 3072
    $region45: #{tpu_custom_call.1} parent=1 // pred_fallthru
      _
    // Predicated region
    $region46: #{tpu_custom_call.1} parent=1 // pred_check
      _
    $region47: #{tpu_custom_call.1} parent=1 // pred_check_branch
      %104 = sbr.rel (0) target = $region49
    $region48: #{tpu_custom_call.1} parent=1 // pred_region
      %105 = dma.done [#allocation8], 512
    $region49: #{tpu_custom_call.1} parent=1 // pred_fallthru
      _
    // Predicated region
    $region50: #{tpu_custom_call.1} parent=1 // pred_check
      _
    $region51: #{tpu_custom_call.1} parent=1 // pred_check_branch
      %107 = sbr.rel (0) target = $region53
    $region52: #{tpu_custom_call.1} parent=1 // pred_region
      %108 = dma.done [#allocation11], 512
    $region53: #{tpu_custom_call.1} parent=1 // pred_fallthru
      _
    // Predicated region
    $region54: #{tpu_custom_call.1} parent=1 // pred_check
      _
    $region55: #{tpu_custom_call.1} parent=1 // pred_check_branch
      %110 = sbr.rel (0) target = $region57
    $region56: #{tpu_custom_call.1} parent=1 // pred_region
      %111 = dma.done [#allocation11], 1024
    $region57: #{tpu_custom_call.1} parent=1 // pred_fallthru
      _
    // Predicated region
    $region58: #{tpu_custom_call.1} parent=1 // pred_check
      _
    $region59: #{tpu_custom_call.1} parent=1 // pred_check_branch
      %113 = sbr.rel (0) target = $region61
    $region60: #{tpu_custom_call.1} parent=1 // pred_region
      %114 = dma.done [#allocation14], 4096
    $region61: #{tpu_custom_call.1} parent=1 // pred_fallthru
      _
    %p115 = scmp.eq.s32.totalorder 0, 0
    // Predicated region
    $region62: #{tpu_custom_call.1} parent=1 // pred_check
      %p116 = pneg %p115
    $region63: #{tpu_custom_call.1} parent=1 // pred_check_branch
      %118 = sbr.rel (%p116) target = $region65
    $region64: #{tpu_custom_call.1} parent=1 // pred_region
      %vm119 = vcmask 261120
      %120 = vst.msk [vmem:[#allocation2] sm:$0xff] %vm119, 0.0
      %121 = vst.msk [vmem:[#allocation3] sm:$0xff] %vm119, 0.0
    $region65: #{tpu_custom_call.1} parent=1 // pred_fallthru
      _
    %v122 = vld [vmem:[#allocation2] sm:$0xff]
    %v123 = vld [vmem:[#allocation4] sm:$0xff]
    %v124 = vld [vmem:[#allocation4 + $0x8] sm:$0xff]
    %v125 = vld [vmem:[#allocation4 + $0x10] sm:$0xff]
    %v126 = vld [vmem:[#allocation4 + $0x18] sm:$0xff]
    %v127 = vld [vmem:[#allocation4 + $0x20] sm:$0xff]
    %v128 = vld [vmem:[#allocation4 + $0x28] sm:$0xff]
    %v129 = vld [vmem:[#allocation4 + $0x30] sm:$0xff]
    %v130 = vld [vmem:[#allocation4 + $0x38] sm:$0xff]
    %v131 = vld [vmem:[#allocation4 + $0x40] sm:$0xff]
    %v132 = vld [vmem:[#allocation4 + $0x48] sm:$0xff]
    %v133 = vld [vmem:[#allocation4 + $0x50] sm:$0xff]
    %v134 = vld [vmem:[#allocation4 + $0x58] sm:$0xff]
    %v135 = vld [vmem:[#allocation4 + $0x60] sm:$0xff]
    %v136 = vld [vmem:[#allocation4 + $0x68] sm:$0xff]
    %v137 = vld [vmem:[#allocation4 + $0x70] sm:$0xff]
    %v138 = vld [vmem:[#allocation4 + $0x78] sm:$0xff]
    %v139 = vld [vmem:[#allocation4 + $0x80] sm:$0xff]
    %v140 = vld [vmem:[#allocation4 + $0x88] sm:$0xff]
    %v141 = vld [vmem:[#allocation4 + $0x90] sm:$0xff]
    %v142 = vld [vmem:[#allocation4 + $0x98] sm:$0xff]
    %v143 = vld [vmem:[#allocation4 + $0xa0] sm:$0xff]
    %v144 = vld [vmem:[#allocation4 + $0xa8] sm:$0xff]
    %v145 = vld [vmem:[#allocation4 + $0xb0] sm:$0xff]
    %v146 = vld [vmem:[#allocation4 + $0xb8] sm:$0xff]
    %vm147 = vcmask 261120
    %v148 = vsel %vm147, %v123, 0.0
    %v149 = vsel %vm147, %v124, 0.0
    %v150 = vadd.f32 %v148, %v149
    %v151 = vsel %vm147, %v125, 0.0
    %v152 = vadd.f32 %v150, %v151
    %v153 = vrot.slane %v152, 4
    %v154 = vadd.f32 %v152, %v153
    %v155 = vrot.slane %v154, 2
    %v156 = vadd.f32 %v154, %v155
    %v157 = vrot.slane %v156, 1
    %v158 = vadd.f32 %v156, %v157
    %v159 = vsel %vm147, %v126, 0.0
    %v160 = vsel %vm147, %v127, 0.0
    %v161 = vadd.f32 %v159, %v160
    %v162 = vsel %vm147, %v128, 0.0
    %v163 = vadd.f32 %v161, %v162
    %v164 = vrot.slane %v163, 4
    %v165 = vadd.f32 %v163, %v164
    %v166 = vrot.slane %v165, 2
    %v167 = vadd.f32 %v165, %v166
    %v168 = vrot.slane %v167, 1
    %v169 = vadd.f32 %v167, %v168
    %v170 = vsel %vm147, %v129, 0.0
    %v171 = vsel %vm147, %v130, 0.0
    %v172 = vadd.f32 %v170, %v171
    %v173 = vsel %vm147, %v131, 0.0
    %v174 = vadd.f32 %v172, %v173
    %v175 = vrot.slane %v174, 4
    %v176 = vadd.f32 %v174, %v175
    %v177 = vrot.slane %v176, 2
    %v178 = vadd.f32 %v176, %v177
    %v179 = vrot.slane %v178, 1
    %v180 = vadd.f32 %v178, %v179
    %v181 = vsel %vm147, %v132, 0.0
    %v182 = vsel %vm147, %v133, 0.0
    %v183 = vadd.f32 %v181, %v182
    %v184 = vsel %vm147, %v134, 0.0
    %v185 = vadd.f32 %v183, %v184
    %v186 = vrot.slane %v185, 4
    %v187 = vadd.f32 %v185, %v186
    %v188 = vrot.slane %v187, 2
    %v189 = vadd.f32 %v187, %v188
    %v190 = vrot.slane %v189, 1
    %v191 = vadd.f32 %v189, %v190
    %v192 = vsel %vm147, %v135, 0.0
    %v193 = vsel %vm147, %v136, 0.0
    %v194 = vadd.f32 %v192, %v193
    %v195 = vsel %vm147, %v137, 0.0
    %v196 = vadd.f32 %v194, %v195
    %v197 = vrot.slane %v196, 4
    %v198 = vadd.f32 %v196, %v197
    %v199 = vrot.slane %v198, 2
    %v200 = vadd.f32 %v198, %v199
    %v201 = vrot.slane %v200, 1
    %v202 = vadd.f32 %v200, %v201
    %v203 = vsel %vm147, %v138, 0.0
    %v204 = vsel %vm147, %v139, 0.0
    %v205 = vadd.f32 %v203, %v204
    %v206 = vsel %vm147, %v140, 0.0
    %v207 = vadd.f32 %v205, %v206
    %v208 = vrot.slane %v207, 4
    %v209 = vadd.f32 %v207, %v208
    %v210 = vrot.slane %v209, 2
    %v211 = vadd.f32 %v209, %v210
    %v212 = vrot.slane %v211, 1
    %v213 = vadd.f32 %v211, %v212
    %v214 = vsel %vm147, %v141, 0.0
    %v215 = vsel %vm147, %v142, 0.0
    %v216 = vadd.f32 %v214, %v215
    %v217 = vsel %vm147, %v143, 0.0
    %v218 = vadd.f32 %v216, %v217
    %v219 = vrot.slane %v218, 4
    %v220 = vadd.f32 %v218, %v219
    %v221 = vrot.slane %v220, 2
    %v222 = vadd.f32 %v220, %v221
    %v223 = vrot.slane %v222, 1
    %v224 = vadd.f32 %v222, %v223
    %v225 = vsel %vm147, %v144, 0.0
    %v226 = vsel %vm147, %v145, 0.0
    %v227 = vadd.f32 %v225, %v226
    %v228 = vsel %vm147, %v146, 0.0
    %v229 = vadd.f32 %v227, %v228
    %v230 = vrot.slane %v229, 4
    %v231 = vadd.f32 %v229, %v230
    %v232 = vrot.slane %v231, 2
    %v233 = vadd.f32 %v231, %v232
    %v234 = vrot.slane %v233, 1
    %v235 = vadd.f32 %v233, %v234
    %vm244 = vcmask 1041409
    %v245 = vsel %vm244, %v169, %v158
    %vm246 = vcmask 1042434
    %v247 = vsel %vm246, %v180, %v245
    %vm248 = vcmask 1043459
    %v249 = vsel %vm248, %v191, %v247
    %vm250 = vcmask 1044484
    %v251 = vsel %vm250, %v202, %v249
    %vm252 = vcmask 1045509
    %v253 = vsel %vm252, %v213, %v251
    %vm254 = vcmask 1046534
    %v255 = vsel %vm254, %v224, %v253
    %vm256 = vcmask 1047559
    %v257 = vsel %vm256, %v235, %v255
    %v259 = vadd.f32 %v122, %v257
    %260 = vst.msk [vmem:[#allocation2] sm:$0xff] %vm147, %v259
    %v261 = vld [vmem:[#allocation3] sm:$0xff]
    %v262 = vld [vmem:[#allocation7] sm:$0xff]
    %v263 = vld [vmem:[#allocation7 + $0x8] sm:$0xff]
    %v264 = vld [vmem:[#allocation7 + $0x10] sm:$0xff]
    %v265 = vld [vmem:[#allocation7 + $0x18] sm:$0xff]
    %v266 = vld [vmem:[#allocation7 + $0x20] sm:$0xff]
    %v267 = vld [vmem:[#allocation7 + $0x28] sm:$0xff]
    %v268 = vld [vmem:[#allocation7 + $0x30] sm:$0xff]
    %v269 = vld [vmem:[#allocation7 + $0x38] sm:$0xff]
    %v270 = vld [vmem:[#allocation7 + $0x40] sm:$0xff]
    %v271 = vld [vmem:[#allocation7 + $0x48] sm:$0xff]
    %v272 = vld [vmem:[#allocation7 + $0x50] sm:$0xff]
    %v273 = vld [vmem:[#allocation7 + $0x58] sm:$0xff]
    %v274 = vld [vmem:[#allocation7 + $0x60] sm:$0xff]
    %v275 = vld [vmem:[#allocation7 + $0x68] sm:$0xff]
    %v276 = vld [vmem:[#allocation7 + $0x70] sm:$0xff]
    %v277 = vld [vmem:[#allocation7 + $0x78] sm:$0xff]
    %v278 = vld [vmem:[#allocation7 + $0x80] sm:$0xff]
    %v279 = vld [vmem:[#allocation7 + $0x88] sm:$0xff]
    %v280 = vld [vmem:[#allocation7 + $0x90] sm:$0xff]
    %v281 = vld [vmem:[#allocation7 + $0x98] sm:$0xff]
    %v282 = vld [vmem:[#allocation7 + $0xa0] sm:$0xff]
    %v283 = vld [vmem:[#allocation7 + $0xa8] sm:$0xff]
    %v284 = vld [vmem:[#allocation7 + $0xb0] sm:$0xff]
    %v285 = vld [vmem:[#allocation7 + $0xb8] sm:$0xff]
    %v286 = vsel %vm147, %v262, 0.0
    %v287 = vsel %vm147, %v263, 0.0
    %v288 = vadd.f32 %v286, %v287
    %v289 = vsel %vm147, %v264, 0.0
    %v290 = vadd.f32 %v288, %v289
    %v291 = vrot.slane %v290, 4
    %v292 = vadd.f32 %v290, %v291
    %v293 = vrot.slane %v292, 2
    %v294 = vadd.f32 %v292, %v293
    %v295 = vrot.slane %v294, 1
    %v296 = vadd.f32 %v294, %v295
    %v297 = vsel %vm147, %v265, 0.0
    %v298 = vsel %vm147, %v266, 0.0
    %v299 = vadd.f32 %v297, %v298
    %v300 = vsel %vm147, %v267, 0.0
    %v301 = vadd.f32 %v299, %v300
    %v302 = vrot.slane %v301, 4
    %v303 = vadd.f32 %v301, %v302
    %v304 = vrot.slane %v303, 2
    %v305 = vadd.f32 %v303, %v304
    %v306 = vrot.slane %v305, 1
    %v307 = vadd.f32 %v305, %v306
    %v308 = vsel %vm147, %v268, 0.0
    %v309 = vsel %vm147, %v269, 0.0
    %v310 = vadd.f32 %v308, %v309
    %v311 = vsel %vm147, %v270, 0.0
    %v312 = vadd.f32 %v310, %v311
    %v313 = vrot.slane %v312, 4
    %v314 = vadd.f32 %v312, %v313
    %v315 = vrot.slane %v314, 2
    %v316 = vadd.f32 %v314, %v315
    %v317 = vrot.slane %v316, 1
    %v318 = vadd.f32 %v316, %v317
    %v319 = vsel %vm147, %v271, 0.0
    %v320 = vsel %vm147, %v272, 0.0
    %v321 = vadd.f32 %v319, %v320
    %v322 = vsel %vm147, %v273, 0.0
    %v323 = vadd.f32 %v321, %v322
    %v324 = vrot.slane %v323, 4
    %v325 = vadd.f32 %v323, %v324
    %v326 = vrot.slane %v325, 2
    %v327 = vadd.f32 %v325, %v326
    %v328 = vrot.slane %v327, 1
    %v329 = vadd.f32 %v327, %v328
    %v330 = vsel %vm147, %v274, 0.0
    %v331 = vsel %vm147, %v275, 0.0
    %v332 = vadd.f32 %v330, %v331
    %v333 = vsel %vm147, %v276, 0.0
    %v334 = vadd.f32 %v332, %v333
    %v335 = vrot.slane %v334, 4
    %v336 = vadd.f32 %v334, %v335
    %v337 = vrot.slane %v336, 2
    %v338 = vadd.f32 %v336, %v337
    %v339 = vrot.slane %v338, 1
    %v340 = vadd.f32 %v338, %v339
    %v341 = vsel %vm147, %v277, 0.0
    %v342 = vsel %vm147, %v278, 0.0
    %v343 = vadd.f32 %v341, %v342
    %v344 = vsel %vm147, %v279, 0.0
    %v345 = vadd.f32 %v343, %v344
    %v346 = vrot.slane %v345, 4
    %v347 = vadd.f32 %v345, %v346
    %v348 = vrot.slane %v347, 2
    %v349 = vadd.f32 %v347, %v348
    %v350 = vrot.slane %v349, 1
    %v351 = vadd.f32 %v349, %v350
    %v352 = vsel %vm147, %v280, 0.0
    %v353 = vsel %vm147, %v281, 0.0
    %v354 = vadd.f32 %v352, %v353
    %v355 = vsel %vm147, %v282, 0.0
    %v356 = vadd.f32 %v354, %v355
    %v357 = vrot.slane %v356, 4
    %v358 = vadd.f32 %v356, %v357
    %v359 = vrot.slane %v358, 2
    %v360 = vadd.f32 %v358, %v359
    %v361 = vrot.slane %v360, 1
    %v362 = vadd.f32 %v360, %v361
    %v363 = vsel %vm147, %v283, 0.0
    %v364 = vsel %vm147, %v284, 0.0
    %v365 = vadd.f32 %v363, %v364
    %v366 = vsel %vm147, %v285, 0.0
    %v367 = vadd.f32 %v365, %v366
    %v368 = vrot.slane %v367, 4
    %v369 = vadd.f32 %v367, %v368
    %v370 = vrot.slane %v369, 2
    %v371 = vadd.f32 %v369, %v370
    %v372 = vrot.slane %v371, 1
    %v373 = vadd.f32 %v371, %v372
    %v382 = vsel %vm244, %v307, %v296
    %v383 = vsel %vm246, %v318, %v382
    %v384 = vsel %vm248, %v329, %v383
    %v385 = vsel %vm250, %v340, %v384
    %v386 = vsel %vm252, %v351, %v385
    %v387 = vsel %vm254, %v362, %v386
    %v388 = vsel %vm256, %v373, %v387
    %v390 = vadd.f32 %v261, %v388
    %391 = vst.msk [vmem:[#allocation3] sm:$0xff] %vm147, %v390
    // Predicated region
    $region66: #{tpu_custom_call.1} parent=1 // pred_check
      %p392 = pneg %p115
    $region67: #{tpu_custom_call.1} parent=1 // pred_check_branch
      %394 = sbr.rel (%p392) target = $region69
    $region68: #{tpu_custom_call.1} parent=1 // pred_region
      %v395 = vld [vmem:[#allocation2] sm:$0xff]
      %v396 = vld [vmem:[#allocation9] sm:$0xff]
      %v397 = vld [vmem:[#allocation9 + $0x8] sm:$0xff]
      %v398 = vld [vmem:[#allocation9 + $0x10] sm:$0xff]
      %v399 = vld [vmem:[#allocation9 + $0x18] sm:$0xff]
      %v400 = vld [vmem:[#allocation3] sm:$0xff]
      %v401 = vld [vmem:[#allocation10] sm:$0xff]
      %v402 = vld [vmem:[#allocation10 + $0x8] sm:$0xff]
      %v403 = vld [vmem:[#allocation10 + $0x10] sm:$0xff]
      %v404 = vld [vmem:[#allocation10 + $0x18] sm:$0xff]
      %v406 = vsel %vm147, %v400, 0
      %408 = vmatprep.subr.mxu0 0.0
      %409 = vmatpush1.msra.mxu0 0.0
      %410 = vmatprep.subr.mxu0 0.0
      %411 = vmatpush1.msra.mxu0 0.0
      %412 = vmatprep.subr.mxu0 0.0
      %413 = vmatpush1.msra.mxu0 0.0
      %414 = vmatprep.subr.mxu0 0.0
      %415 = vmatpush1.msra.mxu0 0.0
      %416 = vmatprep.subr.mxu0 0.0
      %417 = vmatpush1.msra.mxu0 0.0
      %418 = vmatprep.subr.mxu0 0.0
      %419 = vmatpush1.msra.mxu0 0.0
      %420 = vmatprep.subr.mxu0 0.0
      %421 = vmatpush1.msra.mxu0 0.0
      %422 = vmatprep.subr.mxu0 0.0
      %423 = vmatpush1.msra.mxu0 0.0
      %424 = vmatprep.subr.mxu0 0.0
      %425 = vmatpush1.msra.mxu0 0.0
      %426 = vmatprep.subr.mxu0 0.0
      %427 = vmatpush1.msra.mxu0 0.0
      %428 = vmatprep.subr.mxu0 0.0
      %429 = vmatpush1.msra.mxu0 0.0
      %430 = vmatprep.subr.mxu0 0.0
      %431 = vmatpush1.msra.mxu0 0.0
      %432 = vmatprep.subr.mxu0 0.0
      %433 = vmatpush1.msra.mxu0 %v404
      %434 = vmatprep.subr.mxu0 0.0
      %435 = vmatpush1.msra.mxu0 %v403
      %436 = vmatprep.subr.mxu0 0.0
      %437 = vmatpush1.msra.mxu0 %v402
      %438 = vmatprep.subr.mxu0 0.0
      %439 = vmatpush1.msra.mxu0 %v401
      %440 = vmatprep.subr.mxu0 0.0
      %441 = vmatpush2.msra.mxu0 0.0
      %442 = vmatprep.subr.mxu0 0.0
      %443 = vmatpush2.msra.mxu0 0.0
      %444 = vmatprep.subr.mxu0 0.0
      %445 = vmatpush2.msra.mxu0 0.0
      %446 = vmatprep.subr.mxu0 0.0
      %447 = vmatpush2.msra.mxu0 0.0
      %448 = vmatprep.subr.mxu0 0.0
      %449 = vmatpush2.msra.mxu0 0.0
      %450 = vmatprep.subr.mxu0 0.0
      %451 = vmatpush2.msra.mxu0 0.0
      %452 = vmatprep.subr.mxu0 0.0
      %453 = vmatpush2.msra.mxu0 0.0
      %454 = vmatprep.subr.mxu0 0.0
      %455 = vmatpush2.msra.mxu0 0.0
      %456 = vmatprep.subr.mxu0 0.0
      %457 = vmatpush2.msra.mxu0 0.0
      %458 = vmatprep.subr.mxu0 0.0
      %459 = vmatpush2.msra.mxu0 0.0
      %460 = vmatprep.subr.mxu0 0.0
      %461 = vmatpush2.msra.mxu0 0.0
      %462 = vmatprep.subr.mxu0 0.0
      %463 = vmatpush2.msra.mxu0 0.0
      %464 = vmatprep.subr.mxu0 0.0
      %465 = vmatpush2.msra.mxu0 0.0
      %466 = vmatprep.subr.mxu0 0.0
      %467 = vmatpush2.msra.mxu0 0.0
      %468 = vmatprep.subr.mxu0 0.0
      %469 = vmatpush2.msra.mxu0 0.0
      %470 = vmatprep.subr.mxu0 0.0
      %471 = vmatpush2.msra.mxu0 0.0
      %472 = vmatprep.mubr.f32.mxu0 0.0
      %473 = vmatmul.mubr.f32.gmra.mxu0 %v406
      %v474 = vpop.f32.mrf.mxu0
      %v475 = vadd.f32 0.0, %v474
      %v476 = vpop.f32.mrf.mxu0
      %477 = vdwg.mxu0
      %v479 = vsel %vm147, %v395, 0
      %481 = vmatprep.subr.mxu0 0.0
      %482 = vmatpush1.msra.mxu0 0.0
      %483 = vmatprep.subr.mxu0 0.0
      %484 = vmatpush1.msra.mxu0 0.0
      %485 = vmatprep.subr.mxu0 0.0
      %486 = vmatpush1.msra.mxu0 0.0
      %487 = vmatprep.subr.mxu0 0.0
      %488 = vmatpush1.msra.mxu0 0.0
      %489 = vmatprep.subr.mxu0 0.0
      %490 = vmatpush1.msra.mxu0 0.0
      %491 = vmatprep.subr.mxu0 0.0
      %492 = vmatpush1.msra.mxu0 0.0
      %493 = vmatprep.subr.mxu0 0.0
      %494 = vmatpush1.msra.mxu0 0.0
      %495 = vmatprep.subr.mxu0 0.0
      %496 = vmatpush1.msra.mxu0 0.0
      %497 = vmatprep.subr.mxu0 0.0
      %498 = vmatpush1.msra.mxu0 0.0
      %499 = vmatprep.subr.mxu0 0.0
      %500 = vmatpush1.msra.mxu0 0.0
      %501 = vmatprep.subr.mxu0 0.0
      %502 = vmatpush1.msra.mxu0 0.0
      %503 = vmatprep.subr.mxu0 0.0
      %504 = vmatpush1.msra.mxu0 0.0
      %505 = vmatprep.subr.mxu0 0.0
      %506 = vmatpush1.msra.mxu0 %v399
      %507 = vmatprep.subr.mxu0 0.0
      %508 = vmatpush1.msra.mxu0 %v398
      %509 = vmatprep.subr.mxu0 0.0
      %510 = vmatpush1.msra.mxu0 %v397
      %511 = vmatprep.subr.mxu0 0.0
      %512 = vmatpush1.msra.mxu0 %v396
      %513 = vmatprep.subr.mxu0 0.0
      %514 = vmatpush2.msra.mxu0 0.0
      %515 = vmatprep.subr.mxu0 0.0
      %516 = vmatpush2.msra.mxu0 0.0
      %517 = vmatprep.subr.mxu0 0.0
      %518 = vmatpush2.msra.mxu0 0.0
      %519 = vmatprep.subr.mxu0 0.0
      %520 = vmatpush2.msra.mxu0 0.0
      %521 = vmatprep.subr.mxu0 0.0
      %522 = vmatpush2.msra.mxu0 0.0
      %523 = vmatprep.subr.mxu0 0.0
      %524 = vmatpush2.msra.mxu0 0.0
      %525 = vmatprep.subr.mxu0 0.0
      %526 = vmatpush2.msra.mxu0 0.0
      %527 = vmatprep.subr.mxu0 0.0
      %528 = vmatpush2.msra.mxu0 0.0
      %529 = vmatprep.subr.mxu0 0.0
      %530 = vmatpush2.msra.mxu0 0.0
      %531 = vmatprep.subr.mxu0 0.0
      %532 = vmatpush2.msra.mxu0 0.0
      %533 = vmatprep.subr.mxu0 0.0
      %534 = vmatpush2.msra.mxu0 0.0
      %535 = vmatprep.subr.mxu0 0.0
      %536 = vmatpush2.msra.mxu0 0.0
      %537 = vmatprep.subr.mxu0 0.0
      %538 = vmatpush2.msra.mxu0 0.0
      %539 = vmatprep.subr.mxu0 0.0
      %540 = vmatpush2.msra.mxu0 0.0
      %541 = vmatprep.subr.mxu0 0.0
      %542 = vmatpush2.msra.mxu0 0.0
      %543 = vmatprep.subr.mxu0 0.0
      %544 = vmatpush2.msra.mxu0 0.0
      %545 = vmatprep.mubr.f32.mxu0 0.0
      %546 = vmatmul.mubr.f32.gmra.mxu0 %v479
      %v547 = vpop.f32.mrf.mxu0
      %v548 = vadd.f32 %v475, %v547
      %v549 = vpop.f32.mrf.mxu0
      %550 = vdwg.mxu0
      %v551 = vld [vmem:[%s4] sm:$0x1]
      %v553 = vlaneseq
      %v554 = vshrl.u32 %v553, 7
      %v555 = vsub.s32 0, %v554
      %v556 = vrot.slane %v551, %v555
      %v558 = vadd.f32 %v548, %v556
      %v559 = vmax.f32 %v558, 0.0
      %v560 = vld [vmem:[#allocation12] sm:$0xff]
      %v561 = vld [vmem:[#allocation12 + $0x8] sm:$0xff]
      %v562 = vld [vmem:[#allocation12 + $0x10] sm:$0xff]
      %v563 = vld [vmem:[#allocation12 + $0x18] sm:$0xff]
      %v564 = vld [vmem:[#allocation12 + $0x20] sm:$0xff]
      %v565 = vld [vmem:[#allocation12 + $0x28] sm:$0xff]
      %v566 = vld [vmem:[#allocation12 + $0x30] sm:$0xff]
      %v567 = vld [vmem:[#allocation12 + $0x38] sm:$0xff]
      %v568 = vld [vmem:[%s6] sm:$0x1]
      %v570 = vlaneseq
      %v571 = vshrl.u32 %v570, 7
      %v572 = vsub.s32 0, %v571
      %v573 = vrot.slane %v568, %v572
      %vm575 = vcmask 523264
      %v577 = vsel %vm575, %v559, 0
      %579 = vmatprep.subr.mxu0 0.0
      %580 = vmatpush1.msra.mxu0 0.0
      %581 = vmatprep.subr.mxu0 0.0
      %582 = vmatpush1.msra.mxu0 0.0
      %583 = vmatprep.subr.mxu0 0.0
      %584 = vmatpush1.msra.mxu0 0.0
      %585 = vmatprep.subr.mxu0 0.0
      %586 = vmatpush1.msra.mxu0 0.0
      %587 = vmatprep.subr.mxu0 0.0
      %588 = vmatpush1.msra.mxu0 0.0
      %589 = vmatprep.subr.mxu0 0.0
      %590 = vmatpush1.msra.mxu0 0.0
      %591 = vmatprep.subr.mxu0 0.0
      %592 = vmatpush1.msra.mxu0 0.0
      %593 = vmatprep.subr.mxu0 0.0
      %594 = vmatpush1.msra.mxu0 0.0
      %595 = vmatprep.subr.mxu0 0.0
      %596 = vmatpush1.msra.mxu0 %v567
      %597 = vmatprep.subr.mxu0 0.0
      %598 = vmatpush1.msra.mxu0 %v566
      %599 = vmatprep.subr.mxu0 0.0
      %600 = vmatpush1.msra.mxu0 %v565
      %601 = vmatprep.subr.mxu0 0.0
      %602 = vmatpush1.msra.mxu0 %v564
      %603 = vmatprep.subr.mxu0 0.0
      %604 = vmatpush1.msra.mxu0 %v563
      %605 = vmatprep.subr.mxu0 0.0
      %606 = vmatpush1.msra.mxu0 %v562
      %607 = vmatprep.subr.mxu0 0.0
      %608 = vmatpush1.msra.mxu0 %v561
      %609 = vmatprep.subr.mxu0 0.0
      %610 = vmatpush1.msra.mxu0 %v560
      %611 = vmatprep.subr.mxu0 0.0
      %612 = vmatpush2.msra.mxu0 0.0
      %613 = vmatprep.subr.mxu0 0.0
      %614 = vmatpush2.msra.mxu0 0.0
      %615 = vmatprep.subr.mxu0 0.0
      %616 = vmatpush2.msra.mxu0 0.0
      %617 = vmatprep.subr.mxu0 0.0
      %618 = vmatpush2.msra.mxu0 0.0
      %619 = vmatprep.subr.mxu0 0.0
      %620 = vmatpush2.msra.mxu0 0.0
      %621 = vmatprep.subr.mxu0 0.0
      %622 = vmatpush2.msra.mxu0 0.0
      %623 = vmatprep.subr.mxu0 0.0
      %624 = vmatpush2.msra.mxu0 0.0
      %625 = vmatprep.subr.mxu0 0.0
      %626 = vmatpush2.msra.mxu0 0.0
      %627 = vmatprep.subr.mxu0 0.0
      %628 = vmatpush2.msra.mxu0 0.0
      %629 = vmatprep.subr.mxu0 0.0
      %630 = vmatpush2.msra.mxu0 0.0
      %631 = vmatprep.subr.mxu0 0.0
      %632 = vmatpush2.msra.mxu0 0.0
      %633 = vmatprep.subr.mxu0 0.0
      %634 = vmatpush2.msra.mxu0 0.0
      %635 = vmatprep.subr.mxu0 0.0
      %636 = vmatpush2.msra.mxu0 0.0
      %637 = vmatprep.subr.mxu0 0.0
      %638 = vmatpush2.msra.mxu0 0.0
      %639 = vmatprep.subr.mxu0 0.0
      %640 = vmatpush2.msra.mxu0 0.0
      %641 = vmatprep.subr.mxu0 0.0
      %642 = vmatpush2.msra.mxu0 0.0
      %643 = vmatprep.mubr.f32.mxu0 0.0
      %644 = vmatmul.mubr.f32.gmra.mxu0 %v577
      %v645 = vpop.f32.mrf.mxu0
      %v646 = vadd.f32 %v573, %v645
      %v647 = vpop.f32.mrf.mxu0
      %648 = vdwg.mxu0
      %v649 = vmax.f32 %v646, 0.0
      %v650 = vld [vmem:[#allocation13] sm:$0xff]
      %v651 = vld [vmem:[#allocation13 + $0x8] sm:$0xff]
      %v652 = vld [vmem:[#allocation13 + $0x10] sm:$0xff]
      %v653 = vld [vmem:[#allocation13 + $0x18] sm:$0xff]
      %v654 = vld [vmem:[#allocation13 + $0x20] sm:$0xff]
      %v655 = vld [vmem:[#allocation13 + $0x28] sm:$0xff]
      %v656 = vld [vmem:[#allocation13 + $0x30] sm:$0xff]
      %v657 = vld [vmem:[#allocation13 + $0x38] sm:$0xff]
      %v658 = vld [vmem:[#allocation13 + $0x40] sm:$0xff]
      %v659 = vld [vmem:[#allocation13 + $0x48] sm:$0xff]
      %v660 = vld [vmem:[#allocation13 + $0x50] sm:$0xff]
      %v661 = vld [vmem:[#allocation13 + $0x58] sm:$0xff]
      %v662 = vld [vmem:[#allocation13 + $0x60] sm:$0xff]
      %v663 = vld [vmem:[#allocation13 + $0x68] sm:$0xff]
      %v664 = vld [vmem:[#allocation13 + $0x70] sm:$0xff]
      %v665 = vld [vmem:[#allocation13 + $0x78] sm:$0xff]
      %v666 = vld [vmem:[#allocation13 + $0x80] sm:$0xff]
      %v667 = vld [vmem:[#allocation13 + $0x88] sm:$0xff]
      %v668 = vld [vmem:[#allocation13 + $0x90] sm:$0xff]
      %v669 = vld [vmem:[#allocation13 + $0x98] sm:$0xff]
      %v670 = vld [vmem:[#allocation13 + $0xa0] sm:$0xff]
      %v671 = vld [vmem:[#allocation13 + $0xa8] sm:$0xff]
      %v672 = vld [vmem:[#allocation13 + $0xb0] sm:$0xff]
      %v673 = vld [vmem:[#allocation13 + $0xb8] sm:$0xff]
      %v674 = vld [vmem:[#allocation13 + $0xc0] sm:$0xff]
      %v675 = vld [vmem:[#allocation13 + $0xc8] sm:$0xff]
      %v676 = vld [vmem:[#allocation13 + $0xd0] sm:$0xff]
      %v677 = vld [vmem:[#allocation13 + $0xd8] sm:$0xff]
      %v678 = vld [vmem:[#allocation13 + $0xe0] sm:$0xff]
      %v679 = vld [vmem:[#allocation13 + $0xe8] sm:$0xff]
      %v680 = vld [vmem:[#allocation13 + $0xf0] sm:$0xff]
      %v681 = vld [vmem:[#allocation13 + $0xf8] sm:$0xff]
      %v682 = vld [vmem:[%s8] sm:$0xf]
      %v684 = vlaneseq
      %v685 = vshrl.u32 %v684, 7
      %v686 = vsub.s32 0, %v685
      %v687 = vrot.slane %v682, %v686
      %v688 = vlaneseq
      %v689 = vshrl.u32 %v688, 7
      %v690 = vsub.s32 1, %v689
      %v691 = vrot.slane %v682, %v690
      %v692 = vlaneseq
      %v693 = vshrl.u32 %v692, 7
      %v694 = vsub.s32 2, %v693
      %v695 = vrot.slane %v682, %v694
      %v696 = vlaneseq
      %v697 = vshrl.u32 %v696, 7
      %v698 = vsub.s32 3, %v697
      %v699 = vrot.slane %v682, %v698
      %v705 = vsel %vm575, %v649, 0
      %707 = vmatprep.subr.mxu0 0.0
      %708 = vmatpush1.msra.mxu0 0.0
      %709 = vmatprep.subr.mxu0 0.0
      %710 = vmatpush1.msra.mxu0 0.0
      %711 = vmatprep.subr.mxu0 0.0
      %712 = vmatpush1.msra.mxu0 0.0
      %713 = vmatprep.subr.mxu0 0.0
      %714 = vmatpush1.msra.mxu0 0.0
      %715 = vmatprep.subr.mxu0 0.0
      %716 = vmatpush1.msra.mxu0 0.0
      %717 = vmatprep.subr.mxu0 0.0
      %718 = vmatpush1.msra.mxu0 0.0
      %719 = vmatprep.subr.mxu0 0.0
      %720 = vmatpush1.msra.mxu0 0.0
      %721 = vmatprep.subr.mxu0 0.0
      %722 = vmatpush1.msra.mxu0 0.0
      %723 = vmatprep.subr.mxu0 %v679
      %724 = vmatpush1.msra.mxu0 %v678
      %725 = vmatprep.subr.mxu0 %v675
      %726 = vmatpush1.msra.mxu0 %v674
      %727 = vmatprep.subr.mxu0 %v671
      %728 = vmatpush1.msra.mxu0 %v670
      %729 = vmatprep.subr.mxu0 %v667
      %730 = vmatpush1.msra.mxu0 %v666
      %731 = vmatprep.subr.mxu0 %v663
      %732 = vmatpush1.msra.mxu0 %v662
      %733 = vmatprep.subr.mxu0 %v659
      %734 = vmatpush1.msra.mxu0 %v658
      %735 = vmatprep.subr.mxu0 %v655
      %736 = vmatpush1.msra.mxu0 %v654
      %737 = vmatprep.subr.mxu0 %v651
      %738 = vmatpush1.msra.mxu0 %v650
      %739 = vmatprep.subr.mxu0 0.0
      %740 = vmatpush2.msra.mxu0 0.0
      %741 = vmatprep.subr.mxu0 0.0
      %742 = vmatpush2.msra.mxu0 0.0
      %743 = vmatprep.subr.mxu0 0.0
      %744 = vmatpush2.msra.mxu0 0.0
      %745 = vmatprep.subr.mxu0 0.0
      %746 = vmatpush2.msra.mxu0 0.0
      %747 = vmatprep.subr.mxu0 0.0
      %748 = vmatpush2.msra.mxu0 0.0
      %749 = vmatprep.subr.mxu0 0.0
      %750 = vmatpush2.msra.mxu0 0.0
      %751 = vmatprep.subr.mxu0 0.0
      %752 = vmatpush2.msra.mxu0 0.0
      %753 = vmatprep.subr.mxu0 0.0
      %754 = vmatpush2.msra.mxu0 0.0
      %755 = vmatprep.subr.mxu0 0.0
      %756 = vmatpush2.msra.mxu0 0.0
      %757 = vmatprep.subr.mxu0 0.0
      %758 = vmatpush2.msra.mxu0 0.0
      %759 = vmatprep.subr.mxu0 0.0
      %760 = vmatpush2.msra.mxu0 0.0
      %761 = vmatprep.subr.mxu0 0.0
      %762 = vmatpush2.msra.mxu0 0.0
      %763 = vmatprep.subr.mxu0 0.0
      %764 = vmatpush2.msra.mxu0 0.0
      %765 = vmatprep.subr.mxu0 0.0
      %766 = vmatpush2.msra.mxu0 0.0
      %767 = vmatprep.subr.mxu0 0.0
      %768 = vmatpush2.msra.mxu0 0.0
      %769 = vmatprep.subr.mxu0 0.0
      %770 = vmatpush2.msra.mxu0 0.0
      %771 = vmatprep.mubr.f32.mxu0 0.0
      %772 = vmatmul.mubr.f32.gmra.mxu0 %v705
      %v773 = vpop.f32.mrf.mxu0
      %v774 = vadd.f32 %v687, %v773
      %v775 = vpop.f32.mrf.mxu0
      %v776 = vadd.f32 %v691, %v775
      %777 = vdwg.mxu0
      %778 = vmatprep.subr.mxu0 0.0
      %779 = vmatpush1.msra.mxu0 0.0
      %780 = vmatprep.subr.mxu0 0.0
      %781 = vmatpush1.msra.mxu0 0.0
      %782 = vmatprep.subr.mxu0 0.0
      %783 = vmatpush1.msra.mxu0 0.0
      %784 = vmatprep.subr.mxu0 0.0
      %785 = vmatpush1.msra.mxu0 0.0
      %786 = vmatprep.subr.mxu0 0.0
      %787 = vmatpush1.msra.mxu0 0.0
      %788 = vmatprep.subr.mxu0 0.0
      %789 = vmatpush1.msra.mxu0 0.0
      %790 = vmatprep.subr.mxu0 0.0
      %791 = vmatpush1.msra.mxu0 0.0
      %792 = vmatprep.subr.mxu0 0.0
      %793 = vmatpush1.msra.mxu0 0.0
      %794 = vmatprep.subr.mxu0 %v681
      %795 = vmatpush1.msra.mxu0 %v680
      %796 = vmatprep.subr.mxu0 %v677
      %797 = vmatpush1.msra.mxu0 %v676
      %798 = vmatprep.subr.mxu0 %v673
      %799 = vmatpush1.msra.mxu0 %v672
      %800 = vmatprep.subr.mxu0 %v669
      %801 = vmatpush1.msra.mxu0 %v668
      %802 = vmatprep.subr.mxu0 %v665
      %803 = vmatpush1.msra.mxu0 %v664
      %804 = vmatprep.subr.mxu0 %v661
      %805 = vmatpush1.msra.mxu0 %v660
      %806 = vmatprep.subr.mxu0 %v657
      %807 = vmatpush1.msra.mxu0 %v656
      %808 = vmatprep.subr.mxu0 %v653
      %809 = vmatpush1.msra.mxu0 %v652
      %810 = vmatprep.subr.mxu0 0.0
      %811 = vmatpush2.msra.mxu0 0.0
      %812 = vmatprep.subr.mxu0 0.0
      %813 = vmatpush2.msra.mxu0 0.0
      %814 = vmatprep.subr.mxu0 0.0
      %815 = vmatpush2.msra.mxu0 0.0
      %816 = vmatprep.subr.mxu0 0.0
      %817 = vmatpush2.msra.mxu0 0.0
      %818 = vmatprep.subr.mxu0 0.0
      %819 = vmatpush2.msra.mxu0 0.0
      %820 = vmatprep.subr.mxu0 0.0
      %821 = vmatpush2.msra.mxu0 0.0
      %822 = vmatprep.subr.mxu0 0.0
      %823 = vmatpush2.msra.mxu0 0.0
      %824 = vmatprep.subr.mxu0 0.0
      %825 = vmatpush2.msra.mxu0 0.0
      %826 = vmatprep.subr.mxu0 0.0
      %827 = vmatpush2.msra.mxu0 0.0
      %828 = vmatprep.subr.mxu0 0.0
      %829 = vmatpush2.msra.mxu0 0.0
      %830 = vmatprep.subr.mxu0 0.0
      %831 = vmatpush2.msra.mxu0 0.0
      %832 = vmatprep.subr.mxu0 0.0
      %833 = vmatpush2.msra.mxu0 0.0
      %834 = vmatprep.subr.mxu0 0.0
      %835 = vmatpush2.msra.mxu0 0.0
      %836 = vmatprep.subr.mxu0 0.0
      %837 = vmatpush2.msra.mxu0 0.0
      %838 = vmatprep.subr.mxu0 0.0
      %839 = vmatpush2.msra.mxu0 0.0
      %840 = vmatprep.subr.mxu0 0.0
      %841 = vmatpush2.msra.mxu0 0.0
      %842 = vmatprep.mubr.f32.mxu0 0.0
      %843 = vmatmul.mubr.f32.gmra.mxu0 %v705
      %v844 = vpop.f32.mrf.mxu0
      %v845 = vadd.f32 %v695, %v844
      %v846 = vpop.f32.mrf.mxu0
      %v847 = vadd.f32 %v699, %v846
      %848 = vdwg.mxu0
      %849 = vst [vmem:[#allocation15] sm:$0xff] %v774
      %850 = vst [vmem:[#allocation15 + $0x8] sm:$0xff] %v776
      %851 = vst [vmem:[#allocation15 + $0x10] sm:$0xff] %v845
      %852 = vst [vmem:[#allocation15 + $0x18] sm:$0xff] %v847
    $region69: #{tpu_custom_call.1} parent=1 // pred_fallthru
      _
    // Predicated region
    $region70: #{tpu_custom_call.1} parent=1 // pred_check
      _
    $region71: #{tpu_custom_call.1} parent=1 // pred_check_branch
      %854 = sbr.rel (0) target = $region73
    $region72: #{tpu_custom_call.1} parent=1 // pred_region
      %s856 = ssub.s32 512, 512
      %857 = vsyncadd [#allocation6], %s856
      %s859 = sshll.u32 [#allocation15], 4
      %s860 = int_to_ptr.vmem [resolvable:$true] %s859
      %862 = dma.vmem_to_hbm [thread:$0]  %s860, 512, %s9, [#allocation6]
    $region73: #{tpu_custom_call.1} parent=1 // pred_fallthru
      _
    // Predicated region
    $region74: #{tpu_custom_call.1} parent=1 // pred_check
      _
    $region75: #{tpu_custom_call.1} parent=1 // pred_check_branch
      %864 = sbr.rel (0) target = $region77
    $region76: #{tpu_custom_call.1} parent=1 // pred_region
      %865 = dma.done [#allocation6], 512
    $region77: #{tpu_custom_call.1} parent=1 // pred_fallthru
      _
    %866 = vsyncpa [#allocation5], 1
    %867 = vsyncpa [#allocation8], 1
    %868 = vsyncpa [#allocation11], 1
    %869 = vsyncpa [#allocation14], 1
    %870 = vsyncpa [#allocation6], 1

</llo_original>
